<compile_context>
chip_gen: v7x
topology: tpu7x:2x2x1
jax: 0.10.0
libtpu: 0.0.40
codegen_flags: <defaults>
</compile_context>

<pallas_src>
import jax
import jax.numpy as jnp
from jax.experimental import pallas as pl
from jax.experimental.pallas import tpu as pltpu

LANE = 128
VMEM_LIMIT = 48 * 1024 * 1024  # scoped-VMEM headroom under v7x's 64 MiB


def _round_up(x, m):
    return (x + m - 1) // m * m


def _choose_tile(n_pad):
    """Largest tile in {1024..128} dividing n_pad, preferring >= 2 row tiles so
    both v7x TensorCores get work on the 'parallel' row axis."""
    candidates = (1024, 768, 512, 384, 256, 128)
    for t in candidates:
        if n_pad % t == 0 and n_pad // t >= 2:
            return t
    for t in candidates:
        if n_pad % t == 0:
            return t
    return LANE


def _vmem_capacity_bytes():
    try:
        return int(pltpu.get_tpu_info().vmem_capacity_bytes)
    except Exception:
        return 64 * 1024 * 1024


def _a_block_spec(tile, depth=3):
    """A_hat tile spec with deeper pipelining on the dominant N^2 stream."""
    index_map = lambda i, k: (i, k)
    if hasattr(pl, "Buffered"):
        try:
            return pl.BlockSpec((tile, tile), index_map,
                                pipeline_mode=pl.Buffered(depth))
        except TypeError:
            pass
    return pl.BlockSpec((tile, tile), index_map)


# ---------------------------------------------------------------------------
# Kernels
# ---------------------------------------------------------------------------

def _make_agg_kernel(project, relu):
    """acc[i] += A[i,k] @ Z[k]; at k==last: out = (bf16(acc) [@ W]) + b, opt ReLU."""

    if project:
        def kernel(a_ref, z_ref, w_ref, b_ref, o_ref, acc_ref):
            @pl.when(pl.program_id(1) == 0)
            def _():
                acc_ref[...] = jnp.zeros_like(acc_ref)

            acc_ref[...] += jnp.dot(a_ref[...], z_ref[...],
                                    preferred_element_type=jnp.float32)

            @pl.when(pl.program_id(1) == pl.num_programs(1) - 1)
            def _():
                # bf16 x bf16 MXU matmul (f32 accumulate); bias/ReLU in f32.
                y = jnp.dot(acc_ref[...].astype(jnp.bfloat16), w_ref[...],
                            preferred_element_type=jnp.float32) + b_ref[...]
                if relu:
                    y = jnp.maximum(y, 0.0)
                o_ref[...] = y.astype(o_ref.dtype)
    else:
        def kernel(a_ref, z_ref, b_ref, o_ref, acc_ref):
            @pl.when(pl.program_id(1) == 0)
            def _():
                acc_ref[...] = jnp.zeros_like(acc_ref)

            acc_ref[...] += jnp.dot(a_ref[...], z_ref[...],
                                    preferred_element_type=jnp.float32)

            @pl.when(pl.program_id(1) == pl.num_programs(1) - 1)
            def _():
                y = acc_ref[...] + b_ref[...]
                if relu:
                    y = jnp.maximum(y, 0.0)
                o_ref[...] = y.astype(o_ref.dtype)

    return kernel


def _proj_kernel(x_ref, w_ref, o_ref):
    """Row-tiled dense projection: out = X @ W (bf16 operands, f32 accumulate)."""
    o_ref[...] = jnp.dot(x_ref[...], w_ref[...],
                         preferred_element_type=jnp.float32).astype(o_ref.dtype)


def _make_fused_kernel(l1_agg_first, l2_agg_first):
    """Both GCN layers in one kernel; A_hat read from HBM once, VMEM-resident."""

    def kernel(a_ref, x_ref, w1_ref, b1_ref, w2_ref, b2_ref, o_ref):
        a = a_ref[...]
        # ----- layer 1 -----
        if l1_agg_first:
            t = jnp.dot(a, x_ref[...], preferred_element_type=jnp.float32)
            h1 = jnp.dot(t.astype(jnp.bfloat16), w1_ref[...],
                         preferred_element_type=jnp.float32)
        else:
            t = jnp.dot(x_ref[...], w1_ref[...],
                        preferred_element_type=jnp.float32)
            h1 = jnp.dot(a, t.astype(jnp.bfloat16),
                         preferred_element_type=jnp.float32)
        h1 = jnp.maximum(h1 + b1_ref[...], 0.0).astype(jnp.bfloat16)
        # Dropout: eval-mode identity.
        # ----- layer 2 -----
        if l2_agg_first:
            t2 = jnp.dot(a, h1, preferred_element_type=jnp.float32)
            y = jnp.dot(t2.astype(jnp.bfloat16), w2_ref[...],
                        preferred_element_type=jnp.float32)
        else:
            t2 = jnp.dot(h1, w2_ref[...], preferred_element_type=jnp.float32)
            y = jnp.dot(a, t2.astype(jnp.bfloat16),
                        preferred_element_type=jnp.float32)
        o_ref[...] = (y + b2_ref[...]).astype(o_ref.dtype)

    return kernel


# ---------------------------------------------------------------------------
# pallas_call wrappers
# ---------------------------------------------------------------------------

def _aggregate(a, z, b, *, w=None, relu, out_dtype, tile):
    """out = A @ Z (then optional fused @ W) + b, tiled over (rows, cols) of A."""
    n_pad = a.shape[0]
    din = z.shape[1]
    dout = w.shape[1] if w is not None else din
    assert b.shape == (1, dout)
    grid = (n_pad // tile, n_pad // tile)

    in_specs = [
        _a_block_spec(tile),                               # A_hat tile (bf16)
        pl.BlockSpec((tile, din), lambda i, k: (k, 0)),    # Z row band (bf16)
    ]
    args = [a, z]
    if w is not None:
        in_specs.append(pl.BlockSpec((din, dout), lambda i, k: (0, 0)))  # W (bf16)
        args.append(w)
    in_specs.append(pl.BlockSpec((1, dout), lambda i, k: (0, 0)))        # bias (f32)
    args.append(b)

    return pl.pallas_call(
        _make_agg_kernel(project=w is not None, relu=relu),
        out_shape=jax.ShapeDtypeStruct((n_pad, dout), out_dtype),
        grid_spec=pltpu.PrefetchScalarGridSpec(
            num_scalar_prefetch=0,
            grid=grid,
            in_specs=in_specs,
            out_specs=pl.BlockSpec((tile, dout), lambda i, k: (i, 0)),
            scratch_shapes=[pltpu.VMEM((tile, din), jnp.float32)],
        ),
        compiler_params=pltpu.CompilerParams(
            dimension_semantics=("parallel", "arbitrary"),
            vmem_limit_bytes=VMEM_LIMIT,
        ),
    )(*args)


def _project(x, w, *, out_dtype, tile):
    """out = X @ W, row-tiled, W kept VMEM-resident."""
    n_pad, din = x.shape
    dout = w.shape[1]
    return pl.pallas_call(
        _proj_kernel,
        out_shape=jax.ShapeDtypeStruct((n_pad, dout), out_dtype),
        grid_spec=pltpu.PrefetchScalarGridSpec(
            num_scalar_prefetch=0,
            grid=(n_pad // tile,),
            in_specs=[pl.BlockSpec((tile, din), lambda i: (i, 0)),
                      pl.BlockSpec((din, dout), lambda i: (0, 0))],
            out_specs=pl.BlockSpec((tile, dout), lambda i: (i, 0)),
        ),
        compiler_params=pltpu.CompilerParams(
            dimension_semantics=("parallel",),
            vmem_limit_bytes=VMEM_LIMIT,
        ),
    )(x, w)


def gcn_layer(a_p, z_p, w_p, b_p, *, agg_first, relu, out_dtype, tile):
    """One GCNConv layer: out = A_hat @ (Z @ W) + b (optional ReLU)."""
    if agg_first:
        # (A @ Z) @ W : aggregate at width din, projection fused in finalize.
        return _aggregate(a_p, z_p, b_p, w=w_p, relu=relu,
                          out_dtype=out_dtype, tile=tile)
    # A @ (Z @ W) : project once (row-tiled), then aggregate at width dout.
    zw = _project(z_p, w_p, out_dtype=jnp.bfloat16, tile=tile)
    return _aggregate(a_p, zw, b_p, w=None, relu=relu,
                      out_dtype=out_dtype, tile=tile)


def _fused_fits(n_pad, f_pad, h_pad, c_pad):
    """Conservative VMEM estimate for the single-call two-layer kernel."""
    bf2, f4 = 2, 4
    est = (2 * n_pad * n_pad * bf2                  # A_hat (double buffer)
           + n_pad * f_pad * bf2                    # X
           + (f_pad * h_pad + h_pad * c_pad) * bf2  # weights
           + n_pad * max(f_pad, h_pad) * f4         # layer-1 f32 intermediate
           + n_pad * max(h_pad, c_pad) * f4         # layer-2 f32 intermediate
           + n_pad * h_pad * (f4 + bf2)             # h1 (f32 + bf16)
           + 2 * n_pad * c_pad * f4)                # output
    budget = min(_vmem_capacity_bytes(), VMEM_LIMIT) // 2
    return est <= budget


def gcn_forward(a_hat, x, w1, b1, w2, b2, *, tile=None, allow_fuse=True):
    """2-layer GCN forward (eval mode: dropout = identity)."""
    n, f = x.shape
    h = w1.shape[1]
    c = w2.shape[1]
    n_pad = _round_up(n, LANE)
    f_pad = _round_up(f, LANE)
    h_pad = _round_up(h, LANE)
    c_pad = _round_up(c, LANE)
    if tile is None:
        tile = _choose_tile(n_pad)
    assert n_pad % tile == 0

    # bf16 adjacency/features/weights (zero-padded); f32 biases.
    a_p = jnp.zeros((n_pad, n_pad), jnp.bfloat16).at[:n, :n].set(
        a_hat.astype(jnp.bfloat16))
    x_p = jnp.zeros((n_pad, f_pad), jnp.bfloat16).at[:n, :f].set(
        x.astype(jnp.bfloat16))
    w1_p = jnp.zeros((f_pad, h_pad), jnp.bfloat16).at[:f, :h].set(
        w1.astype(jnp.bfloat16))
    b1_p = jnp.zeros((1, h_pad), jnp.float32).at[:, :h].set(b1)
    w2_p = jnp.zeros((h_pad, c_pad), jnp.bfloat16).at[:h, :c].set(
        w2.astype(jnp.bfloat16))
    b2_p = jnp.zeros((1, c_pad), jnp.float32).at[:, :c].set(b2)

    # Contraction order per layer from padded dims: N^2 matmul at the narrow width.
    l1_agg_first = f_pad <= h_pad
    l2_agg_first = h_pad <= c_pad

    if allow_fuse and _fused_fits(n_pad, f_pad, h_pad, c_pad):
        out = pl.pallas_call(
            _make_fused_kernel(l1_agg_first, l2_agg_first),
            out_shape=jax.ShapeDtypeStruct((n_pad, c_pad), jnp.float32),
            compiler_params=pltpu.CompilerParams(vmem_limit_bytes=VMEM_LIMIT),
        )(a_p, x_p, w1_p, b1_p, w2_p, b2_p)
        return out[:n, :c]

    # Layer 1: GCNConv + ReLU.  Dropout: eval-mode identity.
    h1 = gcn_layer(a_p, x_p, w1_p, b1_p, agg_first=l1_agg_first,
                   relu=True, out_dtype=jnp.bfloat16, tile=tile)
    # Layer 2: GCNConv.
    out = gcn_layer(a_p, h1, w2_p, b2_p, agg_first=l2_agg_first,
                    relu=False, out_dtype=jnp.float32, tile=tile)
    return out[:n, :c]


# ---------------------------------------------------------------------------
# Reference (mirrors the kernel's bf16 rounding points and contraction order)
# ---------------------------------------------------------------------------

def gcn_reference(a_hat, x, w1, b1, w2, b2):
    f, h = w1.shape
    c = w2.shape[1]
    f_pad, h_pad, c_pad = (_round_up(d, LANE) for d in (f, h, c))
    bf = lambda v: v.astype(jnp.bfloat16).astype(jnp.float32)
    a = bf(a_hat)
    w1b, w2b = bf(w1), bf(w2)

    def layer(z, wb, b, agg_first, relu):
        if agg_first:
            y = bf(a @ z) @ wb + b
        else:
            y = a @ bf(z @ wb) + b
        return jnp.maximum(y, 0.0) if relu else y

    h1 = bf(layer(bf(x), w1b, b1, f_pad <= h_pad, True))
    return layer(h1, w2b, b2, h_pad <= c_pad, False)


# ---------------------------------------------------------------------------
# Graph / parameter helpers
# ---------------------------------------------------------------------------

def normalized_adjacency(edge_index, num_nodes):
    """Dense GCN normalization: (D+I)^{-1/2} (A+I) (D+I)^{-1/2}."""
    src = edge_index[0]
    dst = edge_index[1]
    a = jnp.zeros((num_nodes, num_nodes), jnp.float32).at[dst, src].set(1.0)
    a = a + jnp.eye(num_nodes, dtype=jnp.float32)
    deg = a.sum(axis=1)
    dinv = jax.lax.rsqrt(deg)
    return a * dinv[:, None] * dinv[None, :]


def glorot(key, shape):
    limit = jnp.sqrt(6.0 / (shape[0] + shape[1]))
    return jax.random.uniform(key, shape, jnp.float32, -limit, limit)


def _run_case(key, n, f, h, c, e, *, allow_fuse):
    k_x, k_src, k_dst, k_w1, k_w2 = jax.random.split(key, 5)
    x = jax.random.normal(k_x, (n, f), jnp.float32)
    edge_index = jnp.stack(
        [jax.random.randint(k_src, (e,), 0, n),
         jax.random.randint(k_dst, (e,), 0, n)], axis=0)
    a_hat = normalized_adjacency(edge_index, n)

    # GCNConv parameters: weight [in, out], bias [out].
    w1 = glorot(k_w1, (f, h))
    b1 = jnp.zeros((1, h), jnp.float32)
    w2 = glorot(k_w2, (h, c))
    b2 = jnp.zeros((1, c), jnp.float32)

    out = gcn_forward(a_hat, x, w1, b1, w2, b2, allow_fuse=allow_fuse)
    jax.block_until_ready(out)
    assert out.shape == (n, c)

    ref = gcn_reference(a_hat, x, w1, b1, w2, b2)
    err = float(jnp.max(jnp.abs(out - ref)))
    assert jnp.allclose(out, ref, atol=2e-2, rtol=2e-2), err
    return err


if __name__ == "__main__":
    key = jax.random.PRNGKey(0)
    k1, k2 = jax.random.split(key)

    # Case 1: tiny graph -> single fused two-layer kernel (A_hat VMEM-resident,
    # read from HBM once).
    _run_case(k1, n=32, f=16, h=32, c=8, e=96, allow_fuse=True)

    # Case 2: larger graph, tiled per-layer path (3x3 A grid, project-first
    # layer 1 via _project + bias-only aggregation, fused-finalize aggregate-
    # first layer 2).  Fusion disabled to exercise the pipelined path.
    _run_case(k2, n=300, f=200, h=64, c=10, e=900, allow_fuse=False)

    print("KERNEL_OK")
</pallas_src>

<mosaic_0001>
module attributes {stable_mosaic.version = 11 : i64} {
  func.func @kernel(%arg0: memref<128x128xbf16, #tpu.memory_space<vmem>>, %arg1: memref<128x128xbf16, #tpu.memory_space<vmem>>, %arg2: memref<128x128xbf16, #tpu.memory_space<vmem>>, %arg3: memref<1x128xf32, #tpu.memory_space<vmem>>, %arg4: memref<128x128xbf16, #tpu.memory_space<vmem>>, %arg5: memref<1x128xf32, #tpu.memory_space<vmem>>, %arg6: memref<128x128xf32, #tpu.memory_space<vmem>>) attributes {dimension_semantics = [], scalar_prefetch = 0 : i64, scratch_operands = 0 : i64, tpu.core_type = #tpu.core_type<tc>} {
    %c0 = arith.constant 0 : index
    %c0_0 = arith.constant 0 : index
    %0 = vector.load %arg0[%c0, %c0_0] : memref<128x128xbf16, #tpu.memory_space<vmem>>, vector<128x128xbf16>
    %c0_1 = arith.constant 0 : index
    %c0_2 = arith.constant 0 : index
    %1 = vector.load %arg1[%c0_1, %c0_2] : memref<128x128xbf16, #tpu.memory_space<vmem>>, vector<128x128xbf16>
    %cst = arith.constant dense<0.000000e+00> : vector<128x128xf32>
    %2 = tpu.matmul %0, %1, %cst {dimension_numbers = #tpu.dot_dimension_numbers<[1], [0], [0], [1], [0, 0, 1, 1], [], []>} : vector<128x128xbf16>, vector<128x128xbf16>, vector<128x128xf32> -> vector<128x128xf32>
    %3 = arith.truncf %2 : vector<128x128xf32> to vector<128x128xbf16>
    %c0_3 = arith.constant 0 : index
    %c0_4 = arith.constant 0 : index
    %4 = vector.load %arg2[%c0_3, %c0_4] : memref<128x128xbf16, #tpu.memory_space<vmem>>, vector<128x128xbf16>
    %cst_5 = arith.constant dense<0.000000e+00> : vector<128x128xf32>
    %5 = tpu.matmul %3, %4, %cst_5 {dimension_numbers = #tpu.dot_dimension_numbers<[1], [0], [0], [1], [0, 0, 1, 1], [], []>} : vector<128x128xbf16>, vector<128x128xbf16>, vector<128x128xf32> -> vector<128x128xf32>
    %c0_6 = arith.constant 0 : index
    %c0_7 = arith.constant 0 : index
    %6 = vector.load %arg3[%c0_6, %c0_7] : memref<1x128xf32, #tpu.memory_space<vmem>>, vector<1x128xf32>
    %7 = vector.broadcast %6 : vector<1x128xf32> to vector<128x128xf32>
    %8 = arith.addf %5, %7 : vector<128x128xf32>
    %cst_8 = arith.constant 0.000000e+00 : f32
    %9 = vector.broadcast %cst_8 : f32 to vector<128x128xf32>
    %10 = arith.maximumf %8, %9 : vector<128x128xf32>
    %11 = arith.truncf %10 : vector<128x128xf32> to vector<128x128xbf16>
    %cst_9 = arith.constant dense<0.000000e+00> : vector<128x128xf32>
    %12 = tpu.matmul %0, %11, %cst_9 {dimension_numbers = #tpu.dot_dimension_numbers<[1], [0], [0], [1], [0, 0, 1, 1], [], []>} : vector<128x128xbf16>, vector<128x128xbf16>, vector<128x128xf32> -> vector<128x128xf32>
    %13 = arith.truncf %12 : vector<128x128xf32> to vector<128x128xbf16>
    %c0_10 = arith.constant 0 : index
    %c0_11 = arith.constant 0 : index
    %14 = vector.load %arg4[%c0_10, %c0_11] : memref<128x128xbf16, #tpu.memory_space<vmem>>, vector<128x128xbf16>
    %cst_12 = arith.constant dense<0.000000e+00> : vector<128x128xf32>
    %15 = tpu.matmul %13, %14, %cst_12 {dimension_numbers = #tpu.dot_dimension_numbers<[1], [0], [0], [1], [0, 0, 1, 1], [], []>} : vector<128x128xbf16>, vector<128x128xbf16>, vector<128x128xf32> -> vector<128x128xf32>
    %c0_13 = arith.constant 0 : index
    %c0_14 = arith.constant 0 : index
    %16 = vector.load %arg5[%c0_13, %c0_14] : memref<1x128xf32, #tpu.memory_space<vmem>>, vector<1x128xf32>
    %17 = vector.broadcast %16 : vector<1x128xf32> to vector<128x128xf32>
    %18 = arith.addf %15, %17 : vector<128x128xf32>
    %c0_15 = arith.constant 0 : index
    %c0_16 = arith.constant 0 : index
    %19 = vector.load %arg6[%c0_15, %c0_16] : memref<128x128xf32, #tpu.memory_space<vmem>>, vector<128x128xf32>
    tpu.vector_store %arg6[%c0_15, %c0_16], %18 {strides = array<i32>} : memref<128x128xf32, #tpu.memory_space<vmem>>, vector<128x128xf32>,
    return
  }
}

</mosaic_0001>

<llo_original>
// kernel: tpu_custom_call.1
$region0: #{tpu_custom_call.1}
  #allocation0 [shape = 'u32[]', space=smem, size = 0x4, offset = 0x4, fixed_abs, tag = 'smem constant byte address 0x4 - core index']
  #allocation1 [shape = 'u32[144,128]{1,0:T(1,128)}', space=vmem, size = 0x12000, scoped, tag = 'internal scratch']
  %s0 = inlined_call_operand.hbm [shape: bf16[128,128], index: 0, kind: input, shape index: {}]
  %s1 = inlined_call_operand.hbm [shape: bf16[128,128], index: 1, kind: input, shape index: {}]
  %s2 = inlined_call_operand.hbm [shape: bf16[128,128], index: 2, kind: input, shape index: {}]
  %s3 = inlined_call_operand.vmem [shape: f32[1,128], index: 3, kind: input, shape index: {}]
  %s4 = inlined_call_operand.hbm [shape: bf16[128,128], index: 4, kind: input, shape index: {}]
  %s5 = inlined_call_operand.vmem [shape: f32[1,128], index: 5, kind: input, shape index: {}]
  %s6 = inlined_call_operand.hbm [shape: f32[128,128], index: 6, kind: output, shape index: {}]
  %s7 = sld [smem:[#allocation0]]
  $region50: #{tpu_custom_call.1} parent=0
    _
  %s9 = ssub.s32 1, %s7
  %s10 = scalar_select 0, %s9, %s7
  $region1: #{tpu_custom_call.1} parent=0
    #allocation2 [shape = 'u8[32768]{0}', space=vmem, size = 0x8000, scoped, tag = 'input window, operand 0, single buffered']
    #allocation3 [shape = 's32[1]{0}', space=sflag, size = 0x4, scoped, tag = 'scoped memory for tpu_custom_call.1']
    #allocation4 [shape = 's32[1]{0}', space=sflag, size = 0x4, scoped, tag = 'scoped memory for tpu_custom_call.1']
    #allocation5 [shape = 'u8[32768]{0}', space=vmem, size = 0x8000, scoped, tag = 'input window, operand 1, single buffered']
    #allocation6 [shape = 's32[1]{0}', space=sflag, size = 0x4, scoped, tag = 'scoped memory for tpu_custom_call.1']
    #allocation7 [shape = 'u8[32768]{0}', space=vmem, size = 0x8000, scoped, tag = 'input window, operand 2, single buffered']
    #allocation8 [shape = 'u8[32768]{0}', space=vmem, size = 0x8000, scoped, tag = 'input window, operand 4, single buffered']
    #allocation9 [shape = 's32[1]{0}', space=sflag, size = 0x4, scoped, tag = 'scoped memory for tpu_custom_call.1']
    #allocation10 [shape = 'u8[65536]{0}', space=vmem, size = 0x10000, scoped, tag = 'output window, operand 0, single buffered']
    %11 = vsyncpa [#allocation3], 0
    %12 = vsyncpa [#allocation6], 0
    %13 = vsyncpa [#allocation9], 0
    %14 = vsyncpa [#allocation4], 0
    // Predicated region
    $region2: #{tpu_custom_call.1} parent=1 // pred_check
      _
    $region3: #{tpu_custom_call.1} parent=1 // pred_check_branch
      %16 = sbr.rel (0) target = $region5
    $region4: #{tpu_custom_call.1} parent=1 // pred_region
      %s18 = ssub.s32 1024, 1024
      %19 = vsyncadd [#allocation3], %s18
      %s20 = sshll.u32 [#allocation2], 4
      %s21 = int_to_ptr.vmem [resolvable:$true] %s20
      %26 = dma.hbm_to_vmem [thread:$0]  %s0, 1024, %s21, [#allocation3], 64, 64, 4
    $region5: #{tpu_custom_call.1} parent=1 // pred_fallthru
      _
    // Predicated region
    $region6: #{tpu_custom_call.1} parent=1 // pred_check
      _
    $region7: #{tpu_custom_call.1} parent=1 // pred_check_branch
      %28 = sbr.rel (0) target = $region9
    $region8: #{tpu_custom_call.1} parent=1 // pred_region
      %s30 = ssub.s32 1024, 1024
      %31 = vsyncadd [#allocation6], %s30
      %s32 = sshll.u32 [#allocation5], 4
      %s33 = int_to_ptr.vmem [resolvable:$true] %s32
      %38 = dma.hbm_to_vmem [thread:$0]  %s1, 1024, %s33, [#allocation6], 64, 64, 4
    $region9: #{tpu_custom_call.1} parent=1 // pred_fallthru
      _
    // Predicated region
    $region10: #{tpu_custom_call.1} parent=1 // pred_check
      _
    $region11: #{tpu_custom_call.1} parent=1 // pred_check_branch
      %40 = sbr.rel (0) target = $region13
    $region12: #{tpu_custom_call.1} parent=1 // pred_region
      %s42 = ssub.s32 1024, 1024
      %43 = vsyncadd [#allocation6], %s42
      %s44 = sshll.u32 [#allocation7], 4
      %s45 = int_to_ptr.vmem [resolvable:$true] %s44
      %50 = dma.hbm_to_vmem [thread:$0]  %s2, 1024, %s45, [#allocation6], 64, 64, 4
    $region13: #{tpu_custom_call.1} parent=1 // pred_fallthru
      _
    // Predicated region
    $region14: #{tpu_custom_call.1} parent=1 // pred_check
      _
    $region15: #{tpu_custom_call.1} parent=1 // pred_check_branch
      %52 = sbr.rel (0) target = $region17
    $region16: #{tpu_custom_call.1} parent=1 // pred_region
      _
    $region17: #{tpu_custom_call.1} parent=1 // pred_fallthru
      _
    // Predicated region
    $region18: #{tpu_custom_call.1} parent=1 // pred_check
      _
    $region19: #{tpu_custom_call.1} parent=1 // pred_check_branch
      %54 = sbr.rel (0) target = $region21
    $region20: #{tpu_custom_call.1} parent=1 // pred_region
      %s56 = ssub.s32 1024, 1024
      %57 = vsyncadd [#allocation9], %s56
      %s58 = sshll.u32 [#allocation8], 4
      %s59 = int_to_ptr.vmem [resolvable:$true] %s58
      %64 = dma.hbm_to_vmem [thread:$0]  %s4, 1024, %s59, [#allocation9], 64, 64, 4
    $region21: #{tpu_custom_call.1} parent=1 // pred_fallthru
      _
    // Predicated region
    $region22: #{tpu_custom_call.1} parent=1 // pred_check
      _
    $region23: #{tpu_custom_call.1} parent=1 // pred_check_branch
      %66 = sbr.rel (0) target = $region25
    $region24: #{tpu_custom_call.1} parent=1 // pred_region
      _
    $region25: #{tpu_custom_call.1} parent=1 // pred_fallthru
      _
    // Predicated region
    $region26: #{tpu_custom_call.1} parent=1 // pred_check
      _
    $region27: #{tpu_custom_call.1} parent=1 // pred_check_branch
      %68 = sbr.rel (0) target = $region29
    $region28: #{tpu_custom_call.1} parent=1 // pred_region
      %69 = dma.done [#allocation3], 1024
    $region29: #{tpu_custom_call.1} parent=1 // pred_fallthru
      _
    // Predicated region
    $region30: #{tpu_custom_call.1} parent=1 // pred_check
      _
    $region31: #{tpu_custom_call.1} parent=1 // pred_check_branch
      %71 = sbr.rel (0) target = $region33
    $region32: #{tpu_custom_call.1} parent=1 // pred_region
      %72 = dma.done [#allocation6], 1024
    $region33: #{tpu_custom_call.1} parent=1 // pred_fallthru
      _
    // Predicated region
    $region34: #{tpu_custom_call.1} parent=1 // pred_check
      _
    $region35: #{tpu_custom_call.1} parent=1 // pred_check_branch
      %74 = sbr.rel (0) target = $region37
    $region36: #{tpu_custom_call.1} parent=1 // pred_region
      %75 = dma.done [#allocation6], 1024
    $region37: #{tpu_custom_call.1} parent=1 // pred_fallthru
      _
    // Predicated region
    $region38: #{tpu_custom_call.1} parent=1 // pred_check
      _
    $region39: #{tpu_custom_call.1} parent=1 // pred_check_branch
      %77 = sbr.rel (0) target = $region41
    $region40: #{tpu_custom_call.1} parent=1 // pred_region
      %78 = dma.done [#allocation9], 1024
    $region41: #{tpu_custom_call.1} parent=1 // pred_fallthru
      _
    %v80 = vld [vmem:[#allocation2] sm:$0xf]
    %v81 = vld [vmem:[#allocation2 + $0x4] sm:$0xf]
    %v82 = vld [vmem:[#allocation2 + $0x8] sm:$0xf]
    %v83 = vld [vmem:[#allocation2 + $0xc] sm:$0xf]
    %v84 = vld [vmem:[#allocation2 + $0x10] sm:$0xf]
    %v85 = vld [vmem:[#allocation2 + $0x14] sm:$0xf]
    %v86 = vld [vmem:[#allocation2 + $0x18] sm:$0xf]
    %v87 = vld [vmem:[#allocation2 + $0x1c] sm:$0xf]
    %v88 = vld [vmem:[#allocation2 + $0x20] sm:$0xf]
    %v89 = vld [vmem:[#allocation2 + $0x24] sm:$0xf]
    %v90 = vld [vmem:[#allocation2 + $0x28] sm:$0xf]
    %v91 = vld [vmem:[#allocation2 + $0x2c] sm:$0xf]
    %v92 = vld [vmem:[#allocation2 + $0x30] sm:$0xf]
    %v93 = vld [vmem:[#allocation2 + $0x34] sm:$0xf]
    %v94 = vld [vmem:[#allocation2 + $0x38] sm:$0xf]
    %v95 = vld [vmem:[#allocation2 + $0x3c] sm:$0xf]
    %v96 = vld [vmem:[#allocation5] sm:$0xf]
    %v97 = vld [vmem:[#allocation5 + $0x4] sm:$0xf]
    %v98 = vld [vmem:[#allocation5 + $0x8] sm:$0xf]
    %v99 = vld [vmem:[#allocation5 + $0xc] sm:$0xf]
    %v100 = vld [vmem:[#allocation5 + $0x10] sm:$0xf]
    %v101 = vld [vmem:[#allocation5 + $0x14] sm:$0xf]
    %v102 = vld [vmem:[#allocation5 + $0x18] sm:$0xf]
    %v103 = vld [vmem:[#allocation5 + $0x1c] sm:$0xf]
    %v104 = vld [vmem:[#allocation5 + $0x20] sm:$0xf]
    %v105 = vld [vmem:[#allocation5 + $0x24] sm:$0xf]
    %v106 = vld [vmem:[#allocation5 + $0x28] sm:$0xf]
    %v107 = vld [vmem:[#allocation5 + $0x2c] sm:$0xf]
    %v108 = vld [vmem:[#allocation5 + $0x30] sm:$0xf]
    %v109 = vld [vmem:[#allocation5 + $0x34] sm:$0xf]
    %v110 = vld [vmem:[#allocation5 + $0x38] sm:$0xf]
    %v111 = vld [vmem:[#allocation5 + $0x3c] sm:$0xf]
    %v128 = vunpack.c.l.b16 %v80
    %v129 = vunpack.c.l.b16 %v81
    %v130 = vunpack.c.l.b16 %v82
    %v131 = vunpack.c.l.b16 %v83
    %v132 = vunpack.c.l.b16 %v84
    %v133 = vunpack.c.l.b16 %v85
    %v134 = vunpack.c.l.b16 %v86
    %v135 = vunpack.c.l.b16 %v87
    %v136 = vunpack.c.l.b16 %v88
    %v137 = vunpack.c.l.b16 %v89
    %v138 = vunpack.c.l.b16 %v90
    %v139 = vunpack.c.l.b16 %v91
    %v140 = vunpack.c.l.b16 %v92
    %v141 = vunpack.c.l.b16 %v93
    %v142 = vunpack.c.l.b16 %v94
    %v143 = vunpack.c.l.b16 %v95
    %v144 = vpack.c.b16 %v129, %v128
    %v145 = vpack.c.b16 %v131, %v130
    %v146 = vpack.c.b16 %v133, %v132
    %v147 = vpack.c.b16 %v135, %v134
    %v148 = vpack.c.b16 %v137, %v136
    %v149 = vpack.c.b16 %v139, %v138
    %v150 = vpack.c.b16 %v141, %v140
    %v151 = vpack.c.b16 %v143, %v142
    %v176 = vunpack.c.l.b16 %v96
    %v177 = vunpack.c.l.b16 %v97
    %v178 = vunpack.c.l.b16 %v98
    %v179 = vunpack.c.l.b16 %v99
    %v180 = vunpack.c.l.b16 %v100
    %v181 = vunpack.c.l.b16 %v101
    %v182 = vunpack.c.l.b16 %v102
    %v183 = vunpack.c.l.b16 %v103
    %v184 = vunpack.c.l.b16 %v104
    %v185 = vunpack.c.l.b16 %v105
    %v186 = vunpack.c.l.b16 %v106
    %v187 = vunpack.c.l.b16 %v107
    %v188 = vunpack.c.l.b16 %v108
    %v189 = vunpack.c.l.b16 %v109
    %v190 = vunpack.c.l.b16 %v110
    %v191 = vunpack.c.l.b16 %v111
    %v192 = vpack.c.b16 %v177, %v176
    %v193 = vpack.c.b16 %v179, %v178
    %v194 = vpack.c.b16 %v181, %v180
    %v195 = vpack.c.b16 %v183, %v182
    %v196 = vpack.c.b16 %v185, %v184
    %v197 = vpack.c.b16 %v187, %v186
    %v198 = vpack.c.b16 %v189, %v188
    %v199 = vpack.c.b16 %v191, %v190
    %208 = vmatprep.subr.bf16.mxu0 0
    %209 = vmatpush1.bf16.msra.mxu0 %v192
    %210 = vmatprep.subr.bf16.mxu0 0
    %211 = vmatpush1.bf16.msra.mxu0 %v193
    %212 = vmatprep.subr.bf16.mxu0 0
    %213 = vmatpush1.bf16.msra.mxu0 %v194
    %214 = vmatprep.subr.bf16.mxu0 0
    %215 = vmatpush1.bf16.msra.mxu0 %v195
    %216 = vmatprep.subr.bf16.mxu0 0
    %217 = vmatpush1.bf16.msra.mxu0 %v196
    %218 = vmatprep.subr.bf16.mxu0 0
    %219 = vmatpush1.bf16.msra.mxu0 %v197
    %220 = vmatprep.subr.bf16.mxu0 0
    %221 = vmatpush1.bf16.msra.mxu0 %v198
    %222 = vmatprep.subr.bf16.mxu0 0
    %223 = vmatpush1.bf16.msra.mxu0 %v199
    %224 = vmatprep.subr.bf16.mxu0 0
    %225 = vmatpush1.bf16.msra.mxu0 0
    %226 = vmatprep.subr.bf16.mxu0 0
    %227 = vmatpush1.bf16.msra.mxu0 0
    %228 = vmatprep.subr.bf16.mxu0 0
    %229 = vmatpush1.bf16.msra.mxu0 0
    %230 = vmatprep.subr.bf16.mxu0 0
    %231 = vmatpush1.bf16.msra.mxu0 0
    %232 = vmatprep.subr.bf16.mxu0 0
    %233 = vmatpush1.bf16.msra.mxu0 0
    %234 = vmatprep.subr.bf16.mxu0 0
    %235 = vmatpush1.bf16.msra.mxu0 0
    %236 = vmatprep.subr.bf16.mxu0 0
    %237 = vmatpush1.bf16.msra.mxu0 0
    %238 = vmatprep.subr.bf16.mxu0 0
    %239 = vmatpush1.bf16.msra.mxu0 0
    %240 = vmatprep.mubr.bf16.mxu0 0
    %241 = vmatmul.mubr.bf16.gmra.mrb[0].mxu0 %v144
    %v242 = vpop.f32.mrb[0].mxu0
    %v243 = vadd.f32 0.0, %v242
    %v244 = vpop.f32.mrb[0].mxu0
    %v245 = vpop.f32.mrb[0].mxu0
    %v246 = vadd.f32 0.0, %v245
    %v247 = vpop.f32.mrb[0].mxu0
    %248 = vmatprep.mubr.bf16.mxu0 0
    %249 = vmatmul.mubr.bf16.gmra.mrb[0].mxu0 %v145
    %v250 = vpop.f32.mrb[0].mxu0
    %v251 = vadd.f32 0.0, %v250
    %v252 = vpop.f32.mrb[0].mxu0
    %v253 = vpop.f32.mrb[0].mxu0
    %v254 = vadd.f32 0.0, %v253
    %v255 = vpop.f32.mrb[0].mxu0
    %256 = vmatprep.mubr.bf16.mxu0 0
    %257 = vmatmul.mubr.bf16.gmra.mrb[0].mxu0 %v146
    %v258 = vpop.f32.mrb[0].mxu0
    %v259 = vadd.f32 0.0, %v258
    %v260 = vpop.f32.mrb[0].mxu0
    %v261 = vpop.f32.mrb[0].mxu0
    %v262 = vadd.f32 0.0, %v261
    %v263 = vpop.f32.mrb[0].mxu0
    %264 = vmatprep.mubr.bf16.mxu0 0
    %265 = vmatmul.mubr.bf16.gmra.mrb[0].mxu0 %v147
    %v266 = vpop.f32.mrb[0].mxu0
    %v267 = vadd.f32 0.0, %v266
    %v268 = vpop.f32.mrb[0].mxu0
    %v269 = vpop.f32.mrb[0].mxu0
    %v270 = vadd.f32 0.0, %v269
    %v271 = vpop.f32.mrb[0].mxu0
    %272 = vmatprep.mubr.bf16.mxu0 0
    %273 = vmatmul.mubr.bf16.gmra.mrb[0].mxu0 %v148
    %v274 = vpop.f32.mrb[0].mxu0
    %v275 = vadd.f32 0.0, %v274
    %v276 = vpop.f32.mrb[0].mxu0
    %v277 = vpop.f32.mrb[0].mxu0
    %v278 = vadd.f32 0.0, %v277
    %v279 = vpop.f32.mrb[0].mxu0
    %280 = vmatprep.mubr.bf16.mxu0 0
    %281 = vmatmul.mubr.bf16.gmra.mrb[0].mxu0 %v149
    %v282 = vpop.f32.mrb[0].mxu0
    %v283 = vadd.f32 0.0, %v282
    %v284 = vpop.f32.mrb[0].mxu0
    %v285 = vpop.f32.mrb[0].mxu0
    %v286 = vadd.f32 0.0, %v285
    %v287 = vpop.f32.mrb[0].mxu0
    %288 = vmatprep.mubr.bf16.mxu0 0
    %289 = vmatmul.mubr.bf16.gmra.mrb[0].mxu0 %v150
    %v290 = vpop.f32.mrb[0].mxu0
    %v291 = vadd.f32 0.0, %v290
    %v292 = vpop.f32.mrb[0].mxu0
    %v293 = vpop.f32.mrb[0].mxu0
    %v294 = vadd.f32 0.0, %v293
    %v295 = vpop.f32.mrb[0].mxu0
    %296 = vmatprep.mubr.bf16.mxu0 0
    %297 = vmatmul.mubr.bf16.gmra.mrb[0].mxu0 %v151
    %v298 = vpop.f32.mrb[0].mxu0
    %v299 = vadd.f32 0.0, %v298
    %v300 = vpop.f32.mrb[0].mxu0
    %v301 = vpop.f32.mrb[0].mxu0
    %v302 = vadd.f32 0.0, %v301
    %v303 = vpop.f32.mrb[0].mxu0
    %304 = vdwg.mxu0
    %v305 = vpack.c.bf16 %v246, %v243
    %v306 = vpack.c.bf16 %v254, %v251
    %v307 = vpack.c.bf16 %v262, %v259
    %v308 = vpack.c.bf16 %v270, %v267
    %v309 = vpack.c.bf16 %v278, %v275
    %v310 = vpack.c.bf16 %v286, %v283
    %v311 = vpack.c.bf16 %v294, %v291
    %v312 = vpack.c.bf16 %v302, %v299
    %v313 = vld [vmem:[#allocation7] sm:$0xf]
    %v314 = vld [vmem:[#allocation7 + $0x4] sm:$0xf]
    %v315 = vld [vmem:[#allocation7 + $0x8] sm:$0xf]
    %v316 = vld [vmem:[#allocation7 + $0xc] sm:$0xf]
    %v317 = vld [vmem:[#allocation7 + $0x10] sm:$0xf]
    %v318 = vld [vmem:[#allocation7 + $0x14] sm:$0xf]
    %v319 = vld [vmem:[#allocation7 + $0x18] sm:$0xf]
    %v320 = vld [vmem:[#allocation7 + $0x1c] sm:$0xf]
    %v321 = vld [vmem:[#allocation7 + $0x20] sm:$0xf]
    %v322 = vld [vmem:[#allocation7 + $0x24] sm:$0xf]
    %v323 = vld [vmem:[#allocation7 + $0x28] sm:$0xf]
    %v324 = vld [vmem:[#allocation7 + $0x2c] sm:$0xf]
    %v325 = vld [vmem:[#allocation7 + $0x30] sm:$0xf]
    %v326 = vld [vmem:[#allocation7 + $0x34] sm:$0xf]
    %v327 = vld [vmem:[#allocation7 + $0x38] sm:$0xf]
    %v328 = vld [vmem:[#allocation7 + $0x3c] sm:$0xf]
    %v329 = vld [vmem:[%s3] sm:$0x1]
    %v331 = vlaneseq
    %v332 = vshrl.u32 %v331, 7
    %v333 = vsub.s32 0, %v332
    %v334 = vrot.slane %v329, %v333
    %v352 = vunpack.c.l.b16 %v313
    %v353 = vunpack.c.l.b16 %v314
    %v354 = vunpack.c.l.b16 %v315
    %v355 = vunpack.c.l.b16 %v316
    %v356 = vunpack.c.l.b16 %v317
    %v357 = vunpack.c.l.b16 %v318
    %v358 = vunpack.c.l.b16 %v319
    %v359 = vunpack.c.l.b16 %v320
    %v360 = vunpack.c.l.b16 %v321
    %v361 = vunpack.c.l.b16 %v322
    %v362 = vunpack.c.l.b16 %v323
    %v363 = vunpack.c.l.b16 %v324
    %v364 = vunpack.c.l.b16 %v325
    %v365 = vunpack.c.l.b16 %v326
    %v366 = vunpack.c.l.b16 %v327
    %v367 = vunpack.c.l.b16 %v328
    %v368 = vpack.c.b16 %v353, %v352
    %v369 = vpack.c.b16 %v355, %v354
    %v370 = vpack.c.b16 %v357, %v356
    %v371 = vpack.c.b16 %v359, %v358
    %v372 = vpack.c.b16 %v361, %v360
    %v373 = vpack.c.b16 %v363, %v362
    %v374 = vpack.c.b16 %v365, %v364
    %v375 = vpack.c.b16 %v367, %v366
    %384 = vmatprep.subr.bf16.mxu0 0
    %385 = vmatpush1.bf16.msra.mxu0 %v368
    %386 = vmatprep.subr.bf16.mxu0 0
    %387 = vmatpush1.bf16.msra.mxu0 %v369
    %388 = vmatprep.subr.bf16.mxu0 0
    %389 = vmatpush1.bf16.msra.mxu0 %v370
    %390 = vmatprep.subr.bf16.mxu0 0
    %391 = vmatpush1.bf16.msra.mxu0 %v371
    %392 = vmatprep.subr.bf16.mxu0 0
    %393 = vmatpush1.bf16.msra.mxu0 %v372
    %394 = vmatprep.subr.bf16.mxu0 0
    %395 = vmatpush1.bf16.msra.mxu0 %v373
    %396 = vmatprep.subr.bf16.mxu0 0
    %397 = vmatpush1.bf16.msra.mxu0 %v374
    %398 = vmatprep.subr.bf16.mxu0 0
    %399 = vmatpush1.bf16.msra.mxu0 %v375
    %400 = vmatprep.subr.bf16.mxu0 0
    %401 = vmatpush1.bf16.msra.mxu0 0
    %402 = vmatprep.subr.bf16.mxu0 0
    %403 = vmatpush1.bf16.msra.mxu0 0
    %404 = vmatprep.subr.bf16.mxu0 0
    %405 = vmatpush1.bf16.msra.mxu0 0
    %406 = vmatprep.subr.bf16.mxu0 0
    %407 = vmatpush1.bf16.msra.mxu0 0
    %408 = vmatprep.subr.bf16.mxu0 0
    %409 = vmatpush1.bf16.msra.mxu0 0
    %410 = vmatprep.subr.bf16.mxu0 0
    %411 = vmatpush1.bf16.msra.mxu0 0
    %412 = vmatprep.subr.bf16.mxu0 0
    %413 = vmatpush1.bf16.msra.mxu0 0
    %414 = vmatprep.subr.bf16.mxu0 0
    %415 = vmatpush1.bf16.msra.mxu0 0
    %416 = vmatprep.mubr.bf16.mxu0 0
    %417 = vmatmul.mubr.bf16.gmra.mrb[0].mxu0 %v305
    %v418 = vpop.f32.mrb[0].mxu0
    %v419 = vadd.f32 %v334, %v418
    %v420 = vpop.f32.mrb[0].mxu0
    %v421 = vpop.f32.mrb[0].mxu0
    %v422 = vadd.f32 %v334, %v421
    %v423 = vpop.f32.mrb[0].mxu0
    %424 = vmatprep.mubr.bf16.mxu0 0
    %425 = vmatmul.mubr.bf16.gmra.mrb[0].mxu0 %v306
    %v426 = vpop.f32.mrb[0].mxu0
    %v427 = vadd.f32 %v334, %v426
    %v428 = vpop.f32.mrb[0].mxu0
    %v429 = vpop.f32.mrb[0].mxu0
    %v430 = vadd.f32 %v334, %v429
    %v431 = vpop.f32.mrb[0].mxu0
    %432 = vmatprep.mubr.bf16.mxu0 0
    %433 = vmatmul.mubr.bf16.gmra.mrb[0].mxu0 %v307
    %v434 = vpop.f32.mrb[0].mxu0
    %v435 = vadd.f32 %v334, %v434
    %v436 = vpop.f32.mrb[0].mxu0
    %v437 = vpop.f32.mrb[0].mxu0
    %v438 = vadd.f32 %v334, %v437
    %v439 = vpop.f32.mrb[0].mxu0
    %440 = vmatprep.mubr.bf16.mxu0 0
    %441 = vmatmul.mubr.bf16.gmra.mrb[0].mxu0 %v308
    %v442 = vpop.f32.mrb[0].mxu0
    %v443 = vadd.f32 %v334, %v442
    %v444 = vpop.f32.mrb[0].mxu0
    %v445 = vpop.f32.mrb[0].mxu0
    %v446 = vadd.f32 %v334, %v445
    %v447 = vpop.f32.mrb[0].mxu0
    %448 = vmatprep.mubr.bf16.mxu0 0
    %449 = vmatmul.mubr.bf16.gmra.mrb[0].mxu0 %v309
    %v450 = vpop.f32.mrb[0].mxu0
    %v451 = vadd.f32 %v334, %v450
    %v452 = vpop.f32.mrb[0].mxu0
    %v453 = vpop.f32.mrb[0].mxu0
    %v454 = vadd.f32 %v334, %v453
    %v455 = vpop.f32.mrb[0].mxu0
    %456 = vmatprep.mubr.bf16.mxu0 0
    %457 = vmatmul.mubr.bf16.gmra.mrb[0].mxu0 %v310
    %v458 = vpop.f32.mrb[0].mxu0
    %v459 = vadd.f32 %v334, %v458
    %v460 = vpop.f32.mrb[0].mxu0
    %v461 = vpop.f32.mrb[0].mxu0
    %v462 = vadd.f32 %v334, %v461
    %v463 = vpop.f32.mrb[0].mxu0
    %464 = vmatprep.mubr.bf16.mxu0 0
    %465 = vmatmul.mubr.bf16.gmra.mrb[0].mxu0 %v311
    %v466 = vpop.f32.mrb[0].mxu0
    %v467 = vadd.f32 %v334, %v466
    %v468 = vpop.f32.mrb[0].mxu0
    %v469 = vpop.f32.mrb[0].mxu0
    %v470 = vadd.f32 %v334, %v469
    %v471 = vpop.f32.mrb[0].mxu0
    %472 = vmatprep.mubr.bf16.mxu0 0
    %473 = vmatmul.mubr.bf16.gmra.mrb[0].mxu0 %v312
    %v474 = vpop.f32.mrb[0].mxu0
    %v475 = vadd.f32 %v334, %v474
    %v476 = vpop.f32.mrb[0].mxu0
    %v477 = vpop.f32.mrb[0].mxu0
    %v478 = vadd.f32 %v334, %v477
    %v479 = vpop.f32.mrb[0].mxu0
    %480 = vdwg.mxu0
    %v481 = vmax.f32 %v419, 0.0
    %v482 = vmax.f32 %v422, 0.0
    %v483 = vmax.f32 %v427, 0.0
    %v484 = vmax.f32 %v430, 0.0
    %v485 = vmax.f32 %v435, 0.0
    %v486 = vmax.f32 %v438, 0.0
    %v487 = vmax.f32 %v443, 0.0
    %v488 = vmax.f32 %v446, 0.0
    %v489 = vmax.f32 %v451, 0.0
    %v490 = vmax.f32 %v454, 0.0
    %v491 = vmax.f32 %v459, 0.0
    %v492 = vmax.f32 %v462, 0.0
    %v493 = vmax.f32 %v467, 0.0
    %v494 = vmax.f32 %v470, 0.0
    %v495 = vmax.f32 %v475, 0.0
    %v496 = vmax.f32 %v478, 0.0
    %v497 = vpack.c.bf16 %v482, %v481
    %v498 = vpack.c.bf16 %v484, %v483
    %v499 = vpack.c.bf16 %v486, %v485
    %v500 = vpack.c.bf16 %v488, %v487
    %v501 = vpack.c.bf16 %v490, %v489
    %v502 = vpack.c.bf16 %v492, %v491
    %v503 = vpack.c.bf16 %v494, %v493
    %v504 = vpack.c.bf16 %v496, %v495
    %505 = vmatprep.subr.bf16.mxu0 0
    %506 = vmatpush1.bf16.msra.mxu0 %v497
    %507 = vmatprep.subr.bf16.mxu0 0
    %508 = vmatpush1.bf16.msra.mxu0 %v498
    %509 = vmatprep.subr.bf16.mxu0 0
    %510 = vmatpush1.bf16.msra.mxu0 %v499
    %511 = vmatprep.subr.bf16.mxu0 0
    %512 = vmatpush1.bf16.msra.mxu0 %v500
    %513 = vmatprep.subr.bf16.mxu0 0
    %514 = vmatpush1.bf16.msra.mxu0 %v501
    %515 = vmatprep.subr.bf16.mxu0 0
    %516 = vmatpush1.bf16.msra.mxu0 %v502
    %517 = vmatprep.subr.bf16.mxu0 0
    %518 = vmatpush1.bf16.msra.mxu0 %v503
    %519 = vmatprep.subr.bf16.mxu0 0
    %520 = vmatpush1.bf16.msra.mxu0 %v504
    %521 = vmatprep.subr.bf16.mxu0 0
    %522 = vmatpush1.bf16.msra.mxu0 0
    %523 = vmatprep.subr.bf16.mxu0 0
    %524 = vmatpush1.bf16.msra.mxu0 0
    %525 = vmatprep.subr.bf16.mxu0 0
    %526 = vmatpush1.bf16.msra.mxu0 0
    %527 = vmatprep.subr.bf16.mxu0 0
    %528 = vmatpush1.bf16.msra.mxu0 0
    %529 = vmatprep.subr.bf16.mxu0 0
    %530 = vmatpush1.bf16.msra.mxu0 0
    %531 = vmatprep.subr.bf16.mxu0 0
    %532 = vmatpush1.bf16.msra.mxu0 0
    %533 = vmatprep.subr.bf16.mxu0 0
    %534 = vmatpush1.bf16.msra.mxu0 0
    %535 = vmatprep.subr.bf16.mxu0 0
    %536 = vmatpush1.bf16.msra.mxu0 0
    %537 = vmatprep.mubr.bf16.mxu0 0
    %538 = vmatmul.mubr.bf16.gmra.mrb[0].mxu0 %v144
    %v539 = vpop.f32.mrb[0].mxu0
    %v540 = vadd.f32 0.0, %v539
    %v541 = vpop.f32.mrb[0].mxu0
    %v542 = vpop.f32.mrb[0].mxu0
    %v543 = vadd.f32 0.0, %v542
    %v544 = vpop.f32.mrb[0].mxu0
    %545 = vmatprep.mubr.bf16.mxu0 0
    %546 = vmatmul.mubr.bf16.gmra.mrb[0].mxu0 %v145
    %v547 = vpop.f32.mrb[0].mxu0
    %v548 = vadd.f32 0.0, %v547
    %v549 = vpop.f32.mrb[0].mxu0
    %v550 = vpop.f32.mrb[0].mxu0
    %v551 = vadd.f32 0.0, %v550
    %v552 = vpop.f32.mrb[0].mxu0
    %553 = vmatprep.mubr.bf16.mxu0 0
    %554 = vmatmul.mubr.bf16.gmra.mrb[0].mxu0 %v146
    %v555 = vpop.f32.mrb[0].mxu0
    %v556 = vadd.f32 0.0, %v555
    %v557 = vpop.f32.mrb[0].mxu0
    %v558 = vpop.f32.mrb[0].mxu0
    %v559 = vadd.f32 0.0, %v558
    %v560 = vpop.f32.mrb[0].mxu0
    %561 = vmatprep.mubr.bf16.mxu0 0
    %562 = vmatmul.mubr.bf16.gmra.mrb[0].mxu0 %v147
    %v563 = vpop.f32.mrb[0].mxu0
    %v564 = vadd.f32 0.0, %v563
    %v565 = vpop.f32.mrb[0].mxu0
    %v566 = vpop.f32.mrb[0].mxu0
    %v567 = vadd.f32 0.0, %v566
    %v568 = vpop.f32.mrb[0].mxu0
    %569 = vmatprep.mubr.bf16.mxu0 0
    %570 = vmatmul.mubr.bf16.gmra.mrb[0].mxu0 %v148
    %v571 = vpop.f32.mrb[0].mxu0
    %v572 = vadd.f32 0.0, %v571
    %v573 = vpop.f32.mrb[0].mxu0
    %v574 = vpop.f32.mrb[0].mxu0
    %v575 = vadd.f32 0.0, %v574
    %v576 = vpop.f32.mrb[0].mxu0
    %577 = vmatprep.mubr.bf16.mxu0 0
    %578 = vmatmul.mubr.bf16.gmra.mrb[0].mxu0 %v149
    %v579 = vpop.f32.mrb[0].mxu0
    %v580 = vadd.f32 0.0, %v579
    %v581 = vpop.f32.mrb[0].mxu0
    %v582 = vpop.f32.mrb[0].mxu0
    %v583 = vadd.f32 0.0, %v582
    %v584 = vpop.f32.mrb[0].mxu0
    %585 = vmatprep.mubr.bf16.mxu0 0
    %586 = vmatmul.mubr.bf16.gmra.mrb[0].mxu0 %v150
    %v587 = vpop.f32.mrb[0].mxu0
    %v588 = vadd.f32 0.0, %v587
    %v589 = vpop.f32.mrb[0].mxu0
    %v590 = vpop.f32.mrb[0].mxu0
    %v591 = vadd.f32 0.0, %v590
    %v592 = vpop.f32.mrb[0].mxu0
    %593 = vmatprep.mubr.bf16.mxu0 0
    %594 = vmatmul.mubr.bf16.gmra.mrb[0].mxu0 %v151
    %v595 = vpop.f32.mrb[0].mxu0
    %v596 = vadd.f32 0.0, %v595
    %v597 = vpop.f32.mrb[0].mxu0
    %v598 = vpop.f32.mrb[0].mxu0
    %v599 = vadd.f32 0.0, %v598
    %v600 = vpop.f32.mrb[0].mxu0
    %601 = vdwg.mxu0
    %v602 = vpack.c.bf16 %v543, %v540
    %v603 = vpack.c.bf16 %v551, %v548
    %v604 = vpack.c.bf16 %v559, %v556
    %v605 = vpack.c.bf16 %v567, %v564
    %v606 = vpack.c.bf16 %v575, %v572
    %v607 = vpack.c.bf16 %v583, %v580
    %v608 = vpack.c.bf16 %v591, %v588
    %v609 = vpack.c.bf16 %v599, %v596
    %v610 = vld [vmem:[#allocation8] sm:$0xf]
    %v611 = vld [vmem:[#allocation8 + $0x4] sm:$0xf]
    %v612 = vld [vmem:[#allocation8 + $0x8] sm:$0xf]
    %v613 = vld [vmem:[#allocation8 + $0xc] sm:$0xf]
    %v614 = vld [vmem:[#allocation8 + $0x10] sm:$0xf]
    %v615 = vld [vmem:[#allocation8 + $0x14] sm:$0xf]
    %v616 = vld [vmem:[#allocation8 + $0x18] sm:$0xf]
    %v617 = vld [vmem:[#allocation8 + $0x1c] sm:$0xf]
    %v618 = vld [vmem:[#allocation8 + $0x20] sm:$0xf]
    %v619 = vld [vmem:[#allocation8 + $0x24] sm:$0xf]
    %v620 = vld [vmem:[#allocation8 + $0x28] sm:$0xf]
    %v621 = vld [vmem:[#allocation8 + $0x2c] sm:$0xf]
    %v622 = vld [vmem:[#allocation8 + $0x30] sm:$0xf]
    %v623 = vld [vmem:[#allocation8 + $0x34] sm:$0xf]
    %v624 = vld [vmem:[#allocation8 + $0x38] sm:$0xf]
    %v625 = vld [vmem:[#allocation8 + $0x3c] sm:$0xf]
    %v626 = vld [vmem:[%s5] sm:$0x1]
    %v628 = vlaneseq
    %v629 = vshrl.u32 %v628, 7
    %v630 = vsub.s32 0, %v629
    %v631 = vrot.slane %v626, %v630
    %v649 = vunpack.c.l.b16 %v610
    %v650 = vunpack.c.l.b16 %v611
    %v651 = vunpack.c.l.b16 %v612
    %v652 = vunpack.c.l.b16 %v613
    %v653 = vunpack.c.l.b16 %v614
    %v654 = vunpack.c.l.b16 %v615
    %v655 = vunpack.c.l.b16 %v616
    %v656 = vunpack.c.l.b16 %v617
    %v657 = vunpack.c.l.b16 %v618
    %v658 = vunpack.c.l.b16 %v619
    %v659 = vunpack.c.l.b16 %v620
    %v660 = vunpack.c.l.b16 %v621
    %v661 = vunpack.c.l.b16 %v622
    %v662 = vunpack.c.l.b16 %v623
    %v663 = vunpack.c.l.b16 %v624
    %v664 = vunpack.c.l.b16 %v625
    %v665 = vpack.c.b16 %v650, %v649
    %v666 = vpack.c.b16 %v652, %v651
    %v667 = vpack.c.b16 %v654, %v653
    %v668 = vpack.c.b16 %v656, %v655
    %v669 = vpack.c.b16 %v658, %v657
    %v670 = vpack.c.b16 %v660, %v659
    %v671 = vpack.c.b16 %v662, %v661
    %v672 = vpack.c.b16 %v664, %v663
    %681 = vmatprep.subr.bf16.mxu0 0
    %682 = vmatpush1.bf16.msra.mxu0 %v665
    %683 = vmatprep.subr.bf16.mxu0 0
    %684 = vmatpush1.bf16.msra.mxu0 %v666
    %685 = vmatprep.subr.bf16.mxu0 0
    %686 = vmatpush1.bf16.msra.mxu0 %v667
    %687 = vmatprep.subr.bf16.mxu0 0
    %688 = vmatpush1.bf16.msra.mxu0 %v668
    %689 = vmatprep.subr.bf16.mxu0 0
    %690 = vmatpush1.bf16.msra.mxu0 %v669
    %691 = vmatprep.subr.bf16.mxu0 0
    %692 = vmatpush1.bf16.msra.mxu0 %v670
    %693 = vmatprep.subr.bf16.mxu0 0
    %694 = vmatpush1.bf16.msra.mxu0 %v671
    %695 = vmatprep.subr.bf16.mxu0 0
    %696 = vmatpush1.bf16.msra.mxu0 %v672
    %697 = vmatprep.subr.bf16.mxu0 0
    %698 = vmatpush1.bf16.msra.mxu0 0
    %699 = vmatprep.subr.bf16.mxu0 0
    %700 = vmatpush1.bf16.msra.mxu0 0
    %701 = vmatprep.subr.bf16.mxu0 0
    %702 = vmatpush1.bf16.msra.mxu0 0
    %703 = vmatprep.subr.bf16.mxu0 0
    %704 = vmatpush1.bf16.msra.mxu0 0
    %705 = vmatprep.subr.bf16.mxu0 0
    %706 = vmatpush1.bf16.msra.mxu0 0
    %707 = vmatprep.subr.bf16.mxu0 0
    %708 = vmatpush1.bf16.msra.mxu0 0
    %709 = vmatprep.subr.bf16.mxu0 0
    %710 = vmatpush1.bf16.msra.mxu0 0
    %711 = vmatprep.subr.bf16.mxu0 0
    %712 = vmatpush1.bf16.msra.mxu0 0
    %713 = vmatprep.mubr.bf16.mxu0 0
    %714 = vmatmul.mubr.bf16.gmra.mrb[0].mxu0 %v602
    %v715 = vpop.f32.mrb[0].mxu0
    %v716 = vadd.f32 %v631, %v715
    %v717 = vpop.f32.mrb[0].mxu0
    %v718 = vpop.f32.mrb[0].mxu0
    %v719 = vadd.f32 %v631, %v718
    %v720 = vpop.f32.mrb[0].mxu0
    %721 = vmatprep.mubr.bf16.mxu0 0
    %722 = vmatmul.mubr.bf16.gmra.mrb[0].mxu0 %v603
    %v723 = vpop.f32.mrb[0].mxu0
    %v724 = vadd.f32 %v631, %v723
    %v725 = vpop.f32.mrb[0].mxu0
    %v726 = vpop.f32.mrb[0].mxu0
    %v727 = vadd.f32 %v631, %v726
    %v728 = vpop.f32.mrb[0].mxu0
    %729 = vmatprep.mubr.bf16.mxu0 0
    %730 = vmatmul.mubr.bf16.gmra.mrb[0].mxu0 %v604
    %v731 = vpop.f32.mrb[0].mxu0
    %v732 = vadd.f32 %v631, %v731
    %v733 = vpop.f32.mrb[0].mxu0
    %v734 = vpop.f32.mrb[0].mxu0
    %v735 = vadd.f32 %v631, %v734
    %v736 = vpop.f32.mrb[0].mxu0
    %737 = vmatprep.mubr.bf16.mxu0 0
    %738 = vmatmul.mubr.bf16.gmra.mrb[0].mxu0 %v605
    %v739 = vpop.f32.mrb[0].mxu0
    %v740 = vadd.f32 %v631, %v739
    %v741 = vpop.f32.mrb[0].mxu0
    %v742 = vpop.f32.mrb[0].mxu0
    %v743 = vadd.f32 %v631, %v742
    %v744 = vpop.f32.mrb[0].mxu0
    %745 = vmatprep.mubr.bf16.mxu0 0
    %746 = vmatmul.mubr.bf16.gmra.mrb[0].mxu0 %v606
    %v747 = vpop.f32.mrb[0].mxu0
    %v748 = vadd.f32 %v631, %v747
    %v749 = vpop.f32.mrb[0].mxu0
    %v750 = vpop.f32.mrb[0].mxu0
    %v751 = vadd.f32 %v631, %v750
    %v752 = vpop.f32.mrb[0].mxu0
    %753 = vmatprep.mubr.bf16.mxu0 0
    %754 = vmatmul.mubr.bf16.gmra.mrb[0].mxu0 %v607
    %v755 = vpop.f32.mrb[0].mxu0
    %v756 = vadd.f32 %v631, %v755
    %v757 = vpop.f32.mrb[0].mxu0
    %v758 = vpop.f32.mrb[0].mxu0
    %v759 = vadd.f32 %v631, %v758
    %v760 = vpop.f32.mrb[0].mxu0
    %761 = vmatprep.mubr.bf16.mxu0 0
    %762 = vmatmul.mubr.bf16.gmra.mrb[0].mxu0 %v608
    %v763 = vpop.f32.mrb[0].mxu0
    %v764 = vadd.f32 %v631, %v763
    %v765 = vpop.f32.mrb[0].mxu0
    %v766 = vpop.f32.mrb[0].mxu0
    %v767 = vadd.f32 %v631, %v766
    %v768 = vpop.f32.mrb[0].mxu0
    %769 = vmatprep.mubr.bf16.mxu0 0
    %770 = vmatmul.mubr.bf16.gmra.mrb[0].mxu0 %v609
    %v771 = vpop.f32.mrb[0].mxu0
    %v772 = vadd.f32 %v631, %v771
    %v773 = vpop.f32.mrb[0].mxu0
    %v774 = vpop.f32.mrb[0].mxu0
    %v775 = vadd.f32 %v631, %v774
    %v776 = vpop.f32.mrb[0].mxu0
    %777 = vdwg.mxu0
    %778 = vst [vmem:[#allocation10] sm:$0xff] %v716
    %779 = vst [vmem:[#allocation10 + $0x8] sm:$0xff] %v719
    %780 = vst [vmem:[#allocation10 + $0x10] sm:$0xff] %v724
    %781 = vst [vmem:[#allocation10 + $0x18] sm:$0xff] %v727
    %782 = vst [vmem:[#allocation10 + $0x20] sm:$0xff] %v732
    %783 = vst [vmem:[#allocation10 + $0x28] sm:$0xff] %v735
    %784 = vst [vmem:[#allocation10 + $0x30] sm:$0xff] %v740
    %785 = vst [vmem:[#allocation10 + $0x38] sm:$0xff] %v743
    %786 = vst [vmem:[#allocation10 + $0x40] sm:$0xff] %v748
    %787 = vst [vmem:[#allocation10 + $0x48] sm:$0xff] %v751
    %788 = vst [vmem:[#allocation10 + $0x50] sm:$0xff] %v756
    %789 = vst [vmem:[#allocation10 + $0x58] sm:$0xff] %v759
    %790 = vst [vmem:[#allocation10 + $0x60] sm:$0xff] %v764
    %791 = vst [vmem:[#allocation10 + $0x68] sm:$0xff] %v767
    %792 = vst [vmem:[#allocation10 + $0x70] sm:$0xff] %v772
    %793 = vst [vmem:[#allocation10 + $0x78] sm:$0xff] %v775
    // Predicated region
    $region42: #{tpu_custom_call.1} parent=1 // pred_check
      _
    $region43: #{tpu_custom_call.1} parent=1 // pred_check_branch
      %795 = sbr.rel (0) target = $region45
    $region44: #{tpu_custom_call.1} parent=1 // pred_region
      %s797 = ssub.s32 2048, 2048
      %798 = vsyncadd [#allocation4], %s797
      %s799 = sshll.u32 [#allocation10], 4
      %s800 = int_to_ptr.vmem [resolvable:$true] %s799
      %805 = dma.vmem_to_hbm [thread:$0]  %s800, 2048, %s6, [#allocation4], 128, 128, 8
    $region45: #{tpu_custom_call.1} parent=1 // pred_fallthru
      _
    // Predicated region
    $region46: #{tpu_custom_call.1} parent=1 // pred_check
      _
    $region47: #{tpu_custom_call.1} parent=1 // pred_check_branch
      %807 = sbr.rel (0) target = $region49
    $region48: #{tpu_custom_call.1} parent=1 // pred_region
      %808 = dma.done [#allocation4], 2048
    $region49: #{tpu_custom_call.1} parent=1 // pred_fallthru
      _
    %809 = vsyncpa [#allocation3], 1
    %810 = vsyncpa [#allocation6], 1
    %811 = vsyncpa [#allocation9], 1
    %812 = vsyncpa [#allocation4], 1

</llo_original>
